<compile_context>
chip_gen: v5e
topology: v5e:2x2
jax: 0.10.0
libtpu: 0.0.40
codegen_flags: <defaults>
</compile_context>

<pallas_src>
import jax
import jax.numpy as jnp
import numpy as np
from jax.experimental import pallas as pl
from jax.experimental.pallas import tpu as pltpu


def _discriminator_kernel(x_ref, w1_ref, b1_ref, w2_ref, b2_ref, o_ref):
    """softmax(relu(x @ W1 + b1) @ W2 + b2), whole batch in one shot."""
    x = x_ref[...]                                                      # (B, D)
    h = jnp.dot(x, w1_ref[...], preferred_element_type=jnp.float32)    # (B, 100)
    h = jnp.maximum(h + b1_ref[...], 0.0)                               # bias + ReLU
    logits = jnp.dot(h, w2_ref[...],
                     preferred_element_type=jnp.float32) + b2_ref[...]  # (B, 2)
    m = jnp.max(logits, axis=-1, keepdims=True)                         # stable softmax
    e = jnp.exp(logits - m)
    o_ref[...] = (e / jnp.sum(e, axis=-1, keepdims=True)).astype(o_ref.dtype)


def discriminator_forward(x, alpha, params):
    """Pallas implementation of Discriminator.forward.

    x: (B, 3*28*28) float32; alpha: scalar (backward-only gradient reversal).
    Returns class probabilities of shape (B, 2).
    """
    del alpha  # forward pass of the gradient-reversal layer is the identity
    w1, b1, w2, b2 = params
    B, D = x.shape
    H = w1.shape[1]
    C = w2.shape[1]
    return pl.pallas_call(
        _discriminator_kernel,
        out_shape=jax.ShapeDtypeStruct((B, C), x.dtype),
        grid=(1,),
        in_specs=[
            pl.BlockSpec((B, D), lambda i: (0, 0)),   # activations: full batch
            pl.BlockSpec((D, H), lambda i: (0, 0)),   # W1 slab (lane-major)
            pl.BlockSpec((1, H), lambda i: (0, 0)),   # b1
            pl.BlockSpec((H, C), lambda i: (0, 0)),   # W2 slab
            pl.BlockSpec((1, C), lambda i: (0, 0)),   # b2
        ],
        out_specs=pl.BlockSpec((B, C), lambda i: (0, 0)),
        compiler_params=pltpu.CompilerParams(
            dimension_semantics=("arbitrary",),
        ),
    )(x, w1, b1, w2, b2)


def reference_forward(x, alpha, params):
    """Pure-JAX reference with the same (default) matmul precision."""
    del alpha
    w1, b1, w2, b2 = params
    h = jnp.maximum(jnp.dot(x, w1, preferred_element_type=jnp.float32) + b1, 0.0)
    logits = jnp.dot(h, w2, preferred_element_type=jnp.float32) + b2
    return jax.nn.softmax(logits, axis=-1)


if __name__ == "__main__":
    key = jax.random.PRNGKey(0)
    k1, k2, k3, k4, k5 = jax.random.split(key, 5)
    B = 2
    D = 3 * 28 * 28            # in_features implied by the module (2352)
    Hdim, C = 100, 2

    x = jax.random.normal(k1, (B, D), jnp.float32)
    alpha = 0.7                # only meaningful for the (backward-only) gradient reversal
    w1 = jax.random.normal(k2, (D, Hdim), jnp.float32) / np.sqrt(D)
    b1 = jax.random.normal(k3, (1, Hdim), jnp.float32) * 0.1
    w2 = jax.random.normal(k4, (Hdim, C), jnp.float32) / np.sqrt(Hdim)
    b2 = jax.random.normal(k5, (1, C), jnp.float32) * 0.1
    params = (w1, b1, w2, b2)

    out = jax.block_until_ready(discriminator_forward(x, alpha, params))
    ref = jax.block_until_ready(reference_forward(x, alpha, params))

    assert out.shape == (B, C), out.shape
    np.testing.assert_allclose(np.asarray(out), np.asarray(ref), rtol=2e-3, atol=2e-3)
    np.testing.assert_allclose(np.asarray(out).sum(axis=-1), np.ones(B),
                               rtol=1e-5, atol=1e-5)  # rows are valid probabilities
    print("KERNEL_OK")
</pallas_src>

<mosaic_0001>
module attributes {stable_mosaic.version = 11 : i64} {
  func.func @_discriminator_kernel(%arg0: i32, %arg1: memref<2x2352xf32, #tpu.memory_space<vmem>>, %arg2: memref<2352x100xf32, #tpu.memory_space<vmem>>, %arg3: memref<1x100xf32, #tpu.memory_space<vmem>>, %arg4: memref<100x2xf32, #tpu.memory_space<vmem>>, %arg5: memref<1x2xf32, #tpu.memory_space<vmem>>, %arg6: memref<2x2xf32, #tpu.memory_space<vmem>>) attributes {dimension_semantics = [#tpu.dimension_semantics<arbitrary>], iteration_bounds = array<i64: 1>, scalar_prefetch = 0 : i64, scratch_operands = 0 : i64, tpu.core_type = #tpu.core_type<tc>, window_params = [{pipeline_mode = #tpu.pipeline_mode<synchronous>, transform_indices = @transform_0, window_bounds = array<i64: 2, 2352>}, {pipeline_mode = #tpu.pipeline_mode<synchronous>, transform_indices = @transform_1, window_bounds = array<i64: 2352, 100>}, {pipeline_mode = #tpu.pipeline_mode<synchronous>, transform_indices = @transform_2, window_bounds = array<i64: 1, 100>}, {pipeline_mode = #tpu.pipeline_mode<synchronous>, transform_indices = @transform_3, window_bounds = array<i64: 100, 2>}, {pipeline_mode = #tpu.pipeline_mode<synchronous>, transform_indices = @transform_4, window_bounds = array<i64: 1, 2>}, {pipeline_mode = #tpu.pipeline_mode<synchronous>, transform_indices = @transform_5, window_bounds = array<i64: 2, 2>}]} {
    %c0 = arith.constant 0 : index
    %c0_0 = arith.constant 0 : index
    %0 = vector.load %arg1[%c0, %c0_0] : memref<2x2352xf32, #tpu.memory_space<vmem>>, vector<2x2352xf32>
    %c0_1 = arith.constant 0 : index
    %c0_2 = arith.constant 0 : index
    %1 = vector.load %arg2[%c0_1, %c0_2] : memref<2352x100xf32, #tpu.memory_space<vmem>>, vector<2352x100xf32>
    %cst = arith.constant dense<0.000000e+00> : vector<2x100xf32>
    %2 = tpu.matmul %0, %1, %cst {dimension_numbers = #tpu.dot_dimension_numbers<[1], [0], [0], [1], [0, 0, 1, 1], [], []>} : vector<2x2352xf32>, vector<2352x100xf32>, vector<2x100xf32> -> vector<2x100xf32>
    %c0_3 = arith.constant 0 : index
    %c0_4 = arith.constant 0 : index
    %3 = vector.load %arg3[%c0_3, %c0_4] : memref<1x100xf32, #tpu.memory_space<vmem>>, vector<1x100xf32>
    %4 = vector.broadcast %3 : vector<1x100xf32> to vector<2x100xf32>
    %5 = arith.addf %2, %4 : vector<2x100xf32>
    %cst_5 = arith.constant 0.000000e+00 : f32
    %6 = vector.broadcast %cst_5 : f32 to vector<2x100xf32>
    %7 = arith.maximumf %5, %6 : vector<2x100xf32>
    %c0_6 = arith.constant 0 : index
    %c0_7 = arith.constant 0 : index
    %8 = vector.load %arg4[%c0_6, %c0_7] : memref<100x2xf32, #tpu.memory_space<vmem>>, vector<100x2xf32>
    %cst_8 = arith.constant dense<0.000000e+00> : vector<2x2xf32>
    %9 = tpu.matmul %7, %8, %cst_8 {dimension_numbers = #tpu.dot_dimension_numbers<[1], [0], [0], [1], [0, 0, 1, 1], [], []>} : vector<2x100xf32>, vector<100x2xf32>, vector<2x2xf32> -> vector<2x2xf32>
    %c0_9 = arith.constant 0 : index
    %c0_10 = arith.constant 0 : index
    %10 = vector.load %arg5[%c0_9, %c0_10] : memref<1x2xf32, #tpu.memory_space<vmem>>, vector<1x2xf32>
    %11 = vector.broadcast %10 : vector<1x2xf32> to vector<2x2xf32>
    %12 = arith.addf %9, %11 : vector<2x2xf32>
    %cst_11 = arith.constant dense<0xFF800000> : vector<2xf32>
    %13 = vector.multi_reduction <maximumf>, %12, %cst_11 [1] : vector<2x2xf32> to vector<2xf32>
    %14 = vector.shape_cast %13 : vector<2xf32> to vector<2x1xf32>
    %15 = vector.broadcast %14 : vector<2x1xf32> to vector<2x2xf32>
    %16 = arith.subf %12, %15 : vector<2x2xf32>
    %17 = math.exp %16 : vector<2x2xf32>
    %cst_12 = arith.constant dense<0.000000e+00> : vector<2xf32>
    %18 = vector.multi_reduction <add>, %17, %cst_12 [1] : vector<2x2xf32> to vector<2xf32>
    %19 = vector.shape_cast %18 : vector<2xf32> to vector<2x1xf32>
    %20 = vector.broadcast %19 : vector<2x1xf32> to vector<2x2xf32>
    %21 = arith.divf %17, %20 : vector<2x2xf32>
    %c0_13 = arith.constant 0 : index
    %c0_14 = arith.constant 0 : index
    %22 = vector.load %arg6[%c0_13, %c0_14] : memref<2x2xf32, #tpu.memory_space<vmem>>, vector<2x2xf32>
    tpu.vector_store %arg6[%c0_13, %c0_14], %21 {strides = array<i32>} : memref<2x2xf32, #tpu.memory_space<vmem>>, vector<2x2xf32>,
    return
  }
  func.func @transform_0(%arg0: i32) -> (i32, i32) {
    %c0_i32 = arith.constant 0 : i32
    %c0_i32_0 = arith.constant 0 : i32
    %c0_i32_1 = arith.constant 0 : i32
    return %c0_i32, %c0_i32_0 : i32, i32
  }
  func.func @transform_1(%arg0: i32) -> (i32, i32) {
    %c0_i32 = arith.constant 0 : i32
    %c0_i32_0 = arith.constant 0 : i32
    %c0_i32_1 = arith.constant 0 : i32
    return %c0_i32, %c0_i32_0 : i32, i32
  }
  func.func @transform_2(%arg0: i32) -> (i32, i32) {
    %c0_i32 = arith.constant 0 : i32
    %c0_i32_0 = arith.constant 0 : i32
    %c0_i32_1 = arith.constant 0 : i32
    return %c0_i32, %c0_i32_0 : i32, i32
  }
  func.func @transform_3(%arg0: i32) -> (i32, i32) {
    %c0_i32 = arith.constant 0 : i32
    %c0_i32_0 = arith.constant 0 : i32
    %c0_i32_1 = arith.constant 0 : i32
    return %c0_i32, %c0_i32_0 : i32, i32
  }
  func.func @transform_4(%arg0: i32) -> (i32, i32) {
    %c0_i32 = arith.constant 0 : i32
    %c0_i32_0 = arith.constant 0 : i32
    %c0_i32_1 = arith.constant 0 : i32
    return %c0_i32, %c0_i32_0 : i32, i32
  }
  func.func @transform_5(%arg0: i32) -> (i32, i32) {
    %c0_i32 = arith.constant 0 : i32
    %c0_i32_0 = arith.constant 0 : i32
    %c0_i32_1 = arith.constant 0 : i32
    return %c0_i32, %c0_i32_0 : i32, i32
  }
}

</mosaic_0001>

<llo_original>
// kernel: tpu_custom_call.1
$region0: #{tpu_custom_call.1}
  #allocation0 [shape = 'u32[]', space=smem, size = 0x4, offset = 0x4, fixed_abs, tag = 'smem constant byte address 0x4 - core index']
  #allocation1 [shape = 'u32[72,128]{1,0:T(1,128)}', space=vmem, size = 0x9000, scoped, tag = 'internal scratch']
  %s0 = inlined_call_operand.vmem [shape: f32[2,2352], index: 0, kind: input, shape index: {}]
  %s1 = inlined_call_operand.vmem [shape: f32[2352,100], index: 1, kind: input, shape index: {}]
  %s2 = inlined_call_operand.vmem [shape: f32[1,100], index: 2, kind: input, shape index: {}]
  %s3 = inlined_call_operand.vmem [shape: f32[100,2], index: 3, kind: input, shape index: {}]
  %s4 = inlined_call_operand.vmem [shape: f32[1,2], index: 4, kind: input, shape index: {}]
  %s5 = inlined_call_operand.hbm [shape: f32[2,2], index: 5, kind: output, shape index: {}]
  %s6 = sld [smem:[#allocation0]]
  $region30: #{tpu_custom_call.1} parent=0
    _
  %s8 = ssub.s32 1, %s6
  %s9 = scalar_select 0, %s8, %s6
  $region1: #{tpu_custom_call.1} parent=0
    #allocation2 [shape = 'u8[1024]{0}', space=vmem, size = 0x400, scoped, tag = 'output window, operand 0, single buffered']
    #allocation3 [shape = 's32[1]{0}', space=sflag, size = 0x4, scoped, tag = 'scoped memory for tpu_custom_call.1']
    %10 = vsyncpa [#allocation3], 0
    // Predicated region
    $region2: #{tpu_custom_call.1} parent=1 // pred_check
      _
    $region3: #{tpu_custom_call.1} parent=1 // pred_check_branch
      %12 = sbr.rel (0) target = $region5
    $region4: #{tpu_custom_call.1} parent=1 // pred_region
      _
    $region5: #{tpu_custom_call.1} parent=1 // pred_fallthru
      _
    // Predicated region
    $region6: #{tpu_custom_call.1} parent=1 // pred_check
      _
    $region7: #{tpu_custom_call.1} parent=1 // pred_check_branch
      %14 = sbr.rel (0) target = $region9
    $region8: #{tpu_custom_call.1} parent=1 // pred_region
      _
    $region9: #{tpu_custom_call.1} parent=1 // pred_fallthru
      _
    // Predicated region
    $region10: #{tpu_custom_call.1} parent=1 // pred_check
      _
    $region11: #{tpu_custom_call.1} parent=1 // pred_check_branch
      %16 = sbr.rel (0) target = $region13
    $region12: #{tpu_custom_call.1} parent=1 // pred_region
      _
    $region13: #{tpu_custom_call.1} parent=1 // pred_fallthru
      _
    // Predicated region
    $region14: #{tpu_custom_call.1} parent=1 // pred_check
      _
    $region15: #{tpu_custom_call.1} parent=1 // pred_check_branch
      %18 = sbr.rel (0) target = $region17
    $region16: #{tpu_custom_call.1} parent=1 // pred_region
      _
    $region17: #{tpu_custom_call.1} parent=1 // pred_fallthru
      _
    // Predicated region
    $region18: #{tpu_custom_call.1} parent=1 // pred_check
      _
    $region19: #{tpu_custom_call.1} parent=1 // pred_check_branch
      %20 = sbr.rel (0) target = $region21
    $region20: #{tpu_custom_call.1} parent=1 // pred_region
      _
    $region21: #{tpu_custom_call.1} parent=1 // pred_fallthru
      _
    %v21 = vld [vmem:[%s0] sm:$0xff]
    %v22 = vld [vmem:[%s0 + $0x8] sm:$0xff]
    %v23 = vld [vmem:[%s0 + $0x10] sm:$0xff]
    %v24 = vld [vmem:[%s0 + $0x18] sm:$0xff]
    %v25 = vld [vmem:[%s0 + $0x20] sm:$0x3f]
    %v26 = vld [vmem:[%s1] sm:$0xff]
    %v27 = vld [vmem:[%s1 + $0x8] sm:$0xff]
    %v28 = vld [vmem:[%s1 + $0x10] sm:$0xff]
    %v29 = vld [vmem:[%s1 + $0x18] sm:$0xff]
    %v30 = vld [vmem:[%s1 + $0x20] sm:$0xff]
    %v31 = vld [vmem:[%s1 + $0x28] sm:$0xff]
    %v32 = vld [vmem:[%s1 + $0x30] sm:$0xff]
    %v33 = vld [vmem:[%s1 + $0x38] sm:$0xff]
    %v34 = vld [vmem:[%s1 + $0x40] sm:$0xff]
    %v35 = vld [vmem:[%s1 + $0x48] sm:$0xff]
    %v36 = vld [vmem:[%s1 + $0x50] sm:$0xff]
    %v37 = vld [vmem:[%s1 + $0x58] sm:$0xff]
    %v38 = vld [vmem:[%s1 + $0x60] sm:$0xff]
    %v39 = vld [vmem:[%s1 + $0x68] sm:$0xff]
    %v40 = vld [vmem:[%s1 + $0x70] sm:$0xff]
    %v41 = vld [vmem:[%s1 + $0x78] sm:$0xff]
    %v42 = vld [vmem:[%s1 + $0x80] sm:$0xff]
    %v43 = vld [vmem:[%s1 + $0x88] sm:$0xff]
    %v44 = vld [vmem:[%s1 + $0x90] sm:$0xff]
    %v45 = vld [vmem:[%s1 + $0x98] sm:$0xff]
    %v46 = vld [vmem:[%s1 + $0xa0] sm:$0xff]
    %v47 = vld [vmem:[%s1 + $0xa8] sm:$0xff]
    %v48 = vld [vmem:[%s1 + $0xb0] sm:$0xff]
    %v49 = vld [vmem:[%s1 + $0xb8] sm:$0xff]
    %v50 = vld [vmem:[%s1 + $0xc0] sm:$0xff]
    %v51 = vld [vmem:[%s1 + $0xc8] sm:$0xff]
    %v52 = vld [vmem:[%s1 + $0xd0] sm:$0xff]
    %v53 = vld [vmem:[%s1 + $0xd8] sm:$0xff]
    %v54 = vld [vmem:[%s1 + $0xe0] sm:$0xff]
    %v55 = vld [vmem:[%s1 + $0xe8] sm:$0xff]
    %v56 = vld [vmem:[%s1 + $0xf0] sm:$0xff]
    %v57 = vld [vmem:[%s1 + $0xf8] sm:$0xff]
    %v58 = vld [vmem:[%s1 + $0x100] sm:$0xff]
    %v59 = vld [vmem:[%s1 + $0x108] sm:$0xff]
    %v60 = vld [vmem:[%s1 + $0x110] sm:$0xff]
    %v61 = vld [vmem:[%s1 + $0x118] sm:$0xff]
    %v62 = vld [vmem:[%s1 + $0x120] sm:$0xff]
    %v63 = vld [vmem:[%s1 + $0x128] sm:$0xff]
    %v64 = vld [vmem:[%s1 + $0x130] sm:$0xff]
    %v65 = vld [vmem:[%s1 + $0x138] sm:$0xff]
    %v66 = vld [vmem:[%s1 + $0x140] sm:$0xff]
    %v67 = vld [vmem:[%s1 + $0x148] sm:$0xff]
    %v68 = vld [vmem:[%s1 + $0x150] sm:$0xff]
    %v69 = vld [vmem:[%s1 + $0x158] sm:$0xff]
    %v70 = vld [vmem:[%s1 + $0x160] sm:$0xff]
    %v71 = vld [vmem:[%s1 + $0x168] sm:$0xff]
    %v72 = vld [vmem:[%s1 + $0x170] sm:$0xff]
    %v73 = vld [vmem:[%s1 + $0x178] sm:$0xff]
    %v74 = vld [vmem:[%s1 + $0x180] sm:$0xff]
    %v75 = vld [vmem:[%s1 + $0x188] sm:$0xff]
    %v76 = vld [vmem:[%s1 + $0x190] sm:$0xff]
    %v77 = vld [vmem:[%s1 + $0x198] sm:$0xff]
    %v78 = vld [vmem:[%s1 + $0x1a0] sm:$0xff]
    %v79 = vld [vmem:[%s1 + $0x1a8] sm:$0xff]
    %v80 = vld [vmem:[%s1 + $0x1b0] sm:$0xff]
    %v81 = vld [vmem:[%s1 + $0x1b8] sm:$0xff]
    %v82 = vld [vmem:[%s1 + $0x1c0] sm:$0xff]
    %v83 = vld [vmem:[%s1 + $0x1c8] sm:$0xff]
    %v84 = vld [vmem:[%s1 + $0x1d0] sm:$0xff]
    %v85 = vld [vmem:[%s1 + $0x1d8] sm:$0xff]
    %v86 = vld [vmem:[%s1 + $0x1e0] sm:$0xff]
    %v87 = vld [vmem:[%s1 + $0x1e8] sm:$0xff]
    %v88 = vld [vmem:[%s1 + $0x1f0] sm:$0xff]
    %v89 = vld [vmem:[%s1 + $0x1f8] sm:$0xff]
    %v90 = vld [vmem:[%s1 + $0x200] sm:$0xff]
    %v91 = vld [vmem:[%s1 + $0x208] sm:$0xff]
    %v92 = vld [vmem:[%s1 + $0x210] sm:$0xff]
    %v93 = vld [vmem:[%s1 + $0x218] sm:$0xff]
    %v94 = vld [vmem:[%s1 + $0x220] sm:$0xff]
    %v95 = vld [vmem:[%s1 + $0x228] sm:$0xff]
    %v96 = vld [vmem:[%s1 + $0x230] sm:$0xff]
    %v97 = vld [vmem:[%s1 + $0x238] sm:$0xff]
    %v98 = vld [vmem:[%s1 + $0x240] sm:$0xff]
    %v99 = vld [vmem:[%s1 + $0x248] sm:$0xff]
    %v100 = vld [vmem:[%s1 + $0x250] sm:$0xff]
    %v101 = vld [vmem:[%s1 + $0x258] sm:$0xff]
    %v102 = vld [vmem:[%s1 + $0x260] sm:$0xff]
    %v103 = vld [vmem:[%s1 + $0x268] sm:$0xff]
    %v104 = vld [vmem:[%s1 + $0x270] sm:$0xff]
    %v105 = vld [vmem:[%s1 + $0x278] sm:$0xff]
    %v106 = vld [vmem:[%s1 + $0x280] sm:$0xff]
    %v107 = vld [vmem:[%s1 + $0x288] sm:$0xff]
    %v108 = vld [vmem:[%s1 + $0x290] sm:$0xff]
    %v109 = vld [vmem:[%s1 + $0x298] sm:$0xff]
    %v110 = vld [vmem:[%s1 + $0x2a0] sm:$0xff]
    %v111 = vld [vmem:[%s1 + $0x2a8] sm:$0xff]
    %v112 = vld [vmem:[%s1 + $0x2b0] sm:$0xff]
    %v113 = vld [vmem:[%s1 + $0x2b8] sm:$0xff]
    %v114 = vld [vmem:[%s1 + $0x2c0] sm:$0xff]
    %v115 = vld [vmem:[%s1 + $0x2c8] sm:$0xff]
    %v116 = vld [vmem:[%s1 + $0x2d0] sm:$0xff]
    %v117 = vld [vmem:[%s1 + $0x2d8] sm:$0xff]
    %v118 = vld [vmem:[%s1 + $0x2e0] sm:$0xff]
    %v119 = vld [vmem:[%s1 + $0x2e8] sm:$0xff]
    %v120 = vld [vmem:[%s1 + $0x2f0] sm:$0xff]
    %v121 = vld [vmem:[%s1 + $0x2f8] sm:$0xff]
    %v122 = vld [vmem:[%s1 + $0x300] sm:$0xff]
    %v123 = vld [vmem:[%s1 + $0x308] sm:$0xff]
    %v124 = vld [vmem:[%s1 + $0x310] sm:$0xff]
    %v125 = vld [vmem:[%s1 + $0x318] sm:$0xff]
    %v126 = vld [vmem:[%s1 + $0x320] sm:$0xff]
    %v127 = vld [vmem:[%s1 + $0x328] sm:$0xff]
    %v128 = vld [vmem:[%s1 + $0x330] sm:$0xff]
    %v129 = vld [vmem:[%s1 + $0x338] sm:$0xff]
    %v130 = vld [vmem:[%s1 + $0x340] sm:$0xff]
    %v131 = vld [vmem:[%s1 + $0x348] sm:$0xff]
    %v132 = vld [vmem:[%s1 + $0x350] sm:$0xff]
    %v133 = vld [vmem:[%s1 + $0x358] sm:$0xff]
    %v134 = vld [vmem:[%s1 + $0x360] sm:$0xff]
    %v135 = vld [vmem:[%s1 + $0x368] sm:$0xff]
    %v136 = vld [vmem:[%s1 + $0x370] sm:$0xff]
    %v137 = vld [vmem:[%s1 + $0x378] sm:$0xff]
    %v138 = vld [vmem:[%s1 + $0x380] sm:$0xff]
    %v139 = vld [vmem:[%s1 + $0x388] sm:$0xff]
    %v140 = vld [vmem:[%s1 + $0x390] sm:$0xff]
    %v141 = vld [vmem:[%s1 + $0x398] sm:$0xff]
    %v142 = vld [vmem:[%s1 + $0x3a0] sm:$0xff]
    %v143 = vld [vmem:[%s1 + $0x3a8] sm:$0xff]
    %v144 = vld [vmem:[%s1 + $0x3b0] sm:$0xff]
    %v145 = vld [vmem:[%s1 + $0x3b8] sm:$0xff]
    %v146 = vld [vmem:[%s1 + $0x3c0] sm:$0xff]
    %v147 = vld [vmem:[%s1 + $0x3c8] sm:$0xff]
    %v148 = vld [vmem:[%s1 + $0x3d0] sm:$0xff]
    %v149 = vld [vmem:[%s1 + $0x3d8] sm:$0xff]
    %v150 = vld [vmem:[%s1 + $0x3e0] sm:$0xff]
    %v151 = vld [vmem:[%s1 + $0x3e8] sm:$0xff]
    %v152 = vld [vmem:[%s1 + $0x3f0] sm:$0xff]
    %v153 = vld [vmem:[%s1 + $0x3f8] sm:$0xff]
    %v154 = vld [vmem:[%s1 + $0x400] sm:$0xff]
    %v155 = vld [vmem:[%s1 + $0x408] sm:$0xff]
    %v156 = vld [vmem:[%s1 + $0x410] sm:$0xff]
    %v157 = vld [vmem:[%s1 + $0x418] sm:$0xff]
    %v158 = vld [vmem:[%s1 + $0x420] sm:$0xff]
    %v159 = vld [vmem:[%s1 + $0x428] sm:$0xff]
    %v160 = vld [vmem:[%s1 + $0x430] sm:$0xff]
    %v161 = vld [vmem:[%s1 + $0x438] sm:$0xff]
    %v162 = vld [vmem:[%s1 + $0x440] sm:$0xff]
    %v163 = vld [vmem:[%s1 + $0x448] sm:$0xff]
    %v164 = vld [vmem:[%s1 + $0x450] sm:$0xff]
    %v165 = vld [vmem:[%s1 + $0x458] sm:$0xff]
    %v166 = vld [vmem:[%s1 + $0x460] sm:$0xff]
    %v167 = vld [vmem:[%s1 + $0x468] sm:$0xff]
    %v168 = vld [vmem:[%s1 + $0x470] sm:$0xff]
    %v169 = vld [vmem:[%s1 + $0x478] sm:$0xff]
    %v170 = vld [vmem:[%s1 + $0x480] sm:$0xff]
    %v171 = vld [vmem:[%s1 + $0x488] sm:$0xff]
    %v172 = vld [vmem:[%s1 + $0x490] sm:$0xff]
    %v173 = vld [vmem:[%s1 + $0x498] sm:$0xff]
    %v174 = vld [vmem:[%s1 + $0x4a0] sm:$0xff]
    %v175 = vld [vmem:[%s1 + $0x4a8] sm:$0xff]
    %v176 = vld [vmem:[%s1 + $0x4b0] sm:$0xff]
    %v177 = vld [vmem:[%s1 + $0x4b8] sm:$0xff]
    %v178 = vld [vmem:[%s1 + $0x4c0] sm:$0xff]
    %v179 = vld [vmem:[%s1 + $0x4c8] sm:$0xff]
    %v180 = vld [vmem:[%s1 + $0x4d0] sm:$0xff]
    %v181 = vld [vmem:[%s1 + $0x4d8] sm:$0xff]
    %v182 = vld [vmem:[%s1 + $0x4e0] sm:$0xff]
    %v183 = vld [vmem:[%s1 + $0x4e8] sm:$0xff]
    %v184 = vld [vmem:[%s1 + $0x4f0] sm:$0xff]
    %v185 = vld [vmem:[%s1 + $0x4f8] sm:$0xff]
    %v186 = vld [vmem:[%s1 + $0x500] sm:$0xff]
    %v187 = vld [vmem:[%s1 + $0x508] sm:$0xff]
    %v188 = vld [vmem:[%s1 + $0x510] sm:$0xff]
    %v189 = vld [vmem:[%s1 + $0x518] sm:$0xff]
    %v190 = vld [vmem:[%s1 + $0x520] sm:$0xff]
    %v191 = vld [vmem:[%s1 + $0x528] sm:$0xff]
    %v192 = vld [vmem:[%s1 + $0x530] sm:$0xff]
    %v193 = vld [vmem:[%s1 + $0x538] sm:$0xff]
    %v194 = vld [vmem:[%s1 + $0x540] sm:$0xff]
    %v195 = vld [vmem:[%s1 + $0x548] sm:$0xff]
    %v196 = vld [vmem:[%s1 + $0x550] sm:$0xff]
    %v197 = vld [vmem:[%s1 + $0x558] sm:$0xff]
    %v198 = vld [vmem:[%s1 + $0x560] sm:$0xff]
    %v199 = vld [vmem:[%s1 + $0x568] sm:$0xff]
    %v200 = vld [vmem:[%s1 + $0x570] sm:$0xff]
    %v201 = vld [vmem:[%s1 + $0x578] sm:$0xff]
    %v202 = vld [vmem:[%s1 + $0x580] sm:$0xff]
    %v203 = vld [vmem:[%s1 + $0x588] sm:$0xff]
    %v204 = vld [vmem:[%s1 + $0x590] sm:$0xff]
    %v205 = vld [vmem:[%s1 + $0x598] sm:$0xff]
    %v206 = vld [vmem:[%s1 + $0x5a0] sm:$0xff]
    %v207 = vld [vmem:[%s1 + $0x5a8] sm:$0xff]
    %v208 = vld [vmem:[%s1 + $0x5b0] sm:$0xff]
    %v209 = vld [vmem:[%s1 + $0x5b8] sm:$0xff]
    %v210 = vld [vmem:[%s1 + $0x5c0] sm:$0xff]
    %v211 = vld [vmem:[%s1 + $0x5c8] sm:$0xff]
    %v212 = vld [vmem:[%s1 + $0x5d0] sm:$0xff]
    %v213 = vld [vmem:[%s1 + $0x5d8] sm:$0xff]
    %v214 = vld [vmem:[%s1 + $0x5e0] sm:$0xff]
    %v215 = vld [vmem:[%s1 + $0x5e8] sm:$0xff]
    %v216 = vld [vmem:[%s1 + $0x5f0] sm:$0xff]
    %v217 = vld [vmem:[%s1 + $0x5f8] sm:$0xff]
    %v218 = vld [vmem:[%s1 + $0x600] sm:$0xff]
    %v219 = vld [vmem:[%s1 + $0x608] sm:$0xff]
    %v220 = vld [vmem:[%s1 + $0x610] sm:$0xff]
    %v221 = vld [vmem:[%s1 + $0x618] sm:$0xff]
    %v222 = vld [vmem:[%s1 + $0x620] sm:$0xff]
    %v223 = vld [vmem:[%s1 + $0x628] sm:$0xff]
    %v224 = vld [vmem:[%s1 + $0x630] sm:$0xff]
    %v225 = vld [vmem:[%s1 + $0x638] sm:$0xff]
    %v226 = vld [vmem:[%s1 + $0x640] sm:$0xff]
    %v227 = vld [vmem:[%s1 + $0x648] sm:$0xff]
    %v228 = vld [vmem:[%s1 + $0x650] sm:$0xff]
    %v229 = vld [vmem:[%s1 + $0x658] sm:$0xff]
    %v230 = vld [vmem:[%s1 + $0x660] sm:$0xff]
    %v231 = vld [vmem:[%s1 + $0x668] sm:$0xff]
    %v232 = vld [vmem:[%s1 + $0x670] sm:$0xff]
    %v233 = vld [vmem:[%s1 + $0x678] sm:$0xff]
    %v234 = vld [vmem:[%s1 + $0x680] sm:$0xff]
    %v235 = vld [vmem:[%s1 + $0x688] sm:$0xff]
    %v236 = vld [vmem:[%s1 + $0x690] sm:$0xff]
    %v237 = vld [vmem:[%s1 + $0x698] sm:$0xff]
    %v238 = vld [vmem:[%s1 + $0x6a0] sm:$0xff]
    %v239 = vld [vmem:[%s1 + $0x6a8] sm:$0xff]
    %v240 = vld [vmem:[%s1 + $0x6b0] sm:$0xff]
    %v241 = vld [vmem:[%s1 + $0x6b8] sm:$0xff]
    %v242 = vld [vmem:[%s1 + $0x6c0] sm:$0xff]
    %v243 = vld [vmem:[%s1 + $0x6c8] sm:$0xff]
    %v244 = vld [vmem:[%s1 + $0x6d0] sm:$0xff]
    %v245 = vld [vmem:[%s1 + $0x6d8] sm:$0xff]
    %v246 = vld [vmem:[%s1 + $0x6e0] sm:$0xff]
    %v247 = vld [vmem:[%s1 + $0x6e8] sm:$0xff]
    %v248 = vld [vmem:[%s1 + $0x6f0] sm:$0xff]
    %v249 = vld [vmem:[%s1 + $0x6f8] sm:$0xff]
    %v250 = vld [vmem:[%s1 + $0x700] sm:$0xff]
    %v251 = vld [vmem:[%s1 + $0x708] sm:$0xff]
    %v252 = vld [vmem:[%s1 + $0x710] sm:$0xff]
    %v253 = vld [vmem:[%s1 + $0x718] sm:$0xff]
    %v254 = vld [vmem:[%s1 + $0x720] sm:$0xff]
    %v255 = vld [vmem:[%s1 + $0x728] sm:$0xff]
    %v256 = vld [vmem:[%s1 + $0x730] sm:$0xff]
    %v257 = vld [vmem:[%s1 + $0x738] sm:$0xff]
    %v258 = vld [vmem:[%s1 + $0x740] sm:$0xff]
    %v259 = vld [vmem:[%s1 + $0x748] sm:$0xff]
    %v260 = vld [vmem:[%s1 + $0x750] sm:$0xff]
    %v261 = vld [vmem:[%s1 + $0x758] sm:$0xff]
    %v262 = vld [vmem:[%s1 + $0x760] sm:$0xff]
    %v263 = vld [vmem:[%s1 + $0x768] sm:$0xff]
    %v264 = vld [vmem:[%s1 + $0x770] sm:$0xff]
    %v265 = vld [vmem:[%s1 + $0x778] sm:$0xff]
    %v266 = vld [vmem:[%s1 + $0x780] sm:$0xff]
    %v267 = vld [vmem:[%s1 + $0x788] sm:$0xff]
    %v268 = vld [vmem:[%s1 + $0x790] sm:$0xff]
    %v269 = vld [vmem:[%s1 + $0x798] sm:$0xff]
    %v270 = vld [vmem:[%s1 + $0x7a0] sm:$0xff]
    %v271 = vld [vmem:[%s1 + $0x7a8] sm:$0xff]
    %v272 = vld [vmem:[%s1 + $0x7b0] sm:$0xff]
    %v273 = vld [vmem:[%s1 + $0x7b8] sm:$0xff]
    %v274 = vld [vmem:[%s1 + $0x7c0] sm:$0xff]
    %v275 = vld [vmem:[%s1 + $0x7c8] sm:$0xff]
    %v276 = vld [vmem:[%s1 + $0x7d0] sm:$0xff]
    %v277 = vld [vmem:[%s1 + $0x7d8] sm:$0xff]
    %v278 = vld [vmem:[%s1 + $0x7e0] sm:$0xff]
    %v279 = vld [vmem:[%s1 + $0x7e8] sm:$0xff]
    %v280 = vld [vmem:[%s1 + $0x7f0] sm:$0xff]
    %v281 = vld [vmem:[%s1 + $0x7f8] sm:$0xff]
    %v282 = vld [vmem:[%s1 + $0x800] sm:$0xff]
    %v283 = vld [vmem:[%s1 + $0x808] sm:$0xff]
    %v284 = vld [vmem:[%s1 + $0x810] sm:$0xff]
    %v285 = vld [vmem:[%s1 + $0x818] sm:$0xff]
    %v286 = vld [vmem:[%s1 + $0x820] sm:$0xff]
    %v287 = vld [vmem:[%s1 + $0x828] sm:$0xff]
    %v288 = vld [vmem:[%s1 + $0x830] sm:$0xff]
    %v289 = vld [vmem:[%s1 + $0x838] sm:$0xff]
    %v290 = vld [vmem:[%s1 + $0x840] sm:$0xff]
    %v291 = vld [vmem:[%s1 + $0x848] sm:$0xff]
    %v292 = vld [vmem:[%s1 + $0x850] sm:$0xff]
    %v293 = vld [vmem:[%s1 + $0x858] sm:$0xff]
    %v294 = vld [vmem:[%s1 + $0x860] sm:$0xff]
    %v295 = vld [vmem:[%s1 + $0x868] sm:$0xff]
    %v296 = vld [vmem:[%s1 + $0x870] sm:$0xff]
    %v297 = vld [vmem:[%s1 + $0x878] sm:$0xff]
    %v298 = vld [vmem:[%s1 + $0x880] sm:$0xff]
    %v299 = vld [vmem:[%s1 + $0x888] sm:$0xff]
    %v300 = vld [vmem:[%s1 + $0x890] sm:$0xff]
    %v301 = vld [vmem:[%s1 + $0x898] sm:$0xff]
    %v302 = vld [vmem:[%s1 + $0x8a0] sm:$0xff]
    %v303 = vld [vmem:[%s1 + $0x8a8] sm:$0xff]
    %v304 = vld [vmem:[%s1 + $0x8b0] sm:$0xff]
    %v305 = vld [vmem:[%s1 + $0x8b8] sm:$0xff]
    %v306 = vld [vmem:[%s1 + $0x8c0] sm:$0xff]
    %v307 = vld [vmem:[%s1 + $0x8c8] sm:$0xff]
    %v308 = vld [vmem:[%s1 + $0x8d0] sm:$0xff]
    %v309 = vld [vmem:[%s1 + $0x8d8] sm:$0xff]
    %v310 = vld [vmem:[%s1 + $0x8e0] sm:$0xff]
    %v311 = vld [vmem:[%s1 + $0x8e8] sm:$0xff]
    %v312 = vld [vmem:[%s1 + $0x8f0] sm:$0xff]
    %v313 = vld [vmem:[%s1 + $0x8f8] sm:$0xff]
    %v314 = vld [vmem:[%s1 + $0x900] sm:$0xff]
    %v315 = vld [vmem:[%s1 + $0x908] sm:$0xff]
    %v316 = vld [vmem:[%s1 + $0x910] sm:$0xff]
    %v317 = vld [vmem:[%s1 + $0x918] sm:$0xff]
    %v318 = vld [vmem:[%s1 + $0x920] sm:$0xff]
    %v319 = vld [vmem:[%s1 + $0x928] sm:$0xff]
    %v320 = vld [vmem:[%s2] sm:$0x1]
    %v322 = vperm.slane %v320, 0
    %329 = vst [vmem:[#allocation1] ss:$4 sm:$0xff] %v21
    %s330 = scalar_lea.vmem [#allocation1], 32
    %331 = vst [vmem:[%s330] ss:$4 sm:$0xff] %v22
    %v332 = vld.sshfl [vmem:[#allocation1] sm:$0xff pattern:$0x73625140]
    %v333 = vld.sshfl [vmem:[#allocation1 + $0x8] sm:$0xff pattern:$0x73625140]
    %v334 = vld.sshfl [vmem:[#allocation1 + $0x10] sm:$0xff pattern:$0x73625140]
    %v335 = vld.sshfl [vmem:[#allocation1 + $0x18] sm:$0xff pattern:$0x73625140]
    %v336 = vld.sshfl [vmem:[#allocation1 + $0x20] sm:$0xff pattern:$0x73625140]
    %v337 = vld.sshfl [vmem:[#allocation1 + $0x28] sm:$0xff pattern:$0x73625140]
    %v338 = vld.sshfl [vmem:[#allocation1 + $0x30] sm:$0xff pattern:$0x73625140]
    %v339 = vld.sshfl [vmem:[#allocation1 + $0x38] sm:$0xff pattern:$0x73625140]
    %340 = vst [vmem:[#allocation1] ss:$4 sm:$0xff] %v23
    %341 = vst [vmem:[%s330] ss:$4 sm:$0xff] %v24
    %v342 = vld.sshfl [vmem:[#allocation1] sm:$0xff pattern:$0x73625140]
    %v343 = vld.sshfl [vmem:[#allocation1 + $0x8] sm:$0xff pattern:$0x73625140]
    %v344 = vld.sshfl [vmem:[#allocation1 + $0x10] sm:$0xff pattern:$0x73625140]
    %v345 = vld.sshfl [vmem:[#allocation1 + $0x18] sm:$0xff pattern:$0x73625140]
    %v346 = vld.sshfl [vmem:[#allocation1 + $0x20] sm:$0xff pattern:$0x73625140]
    %v347 = vld.sshfl [vmem:[#allocation1 + $0x28] sm:$0xff pattern:$0x73625140]
    %v348 = vld.sshfl [vmem:[#allocation1 + $0x30] sm:$0xff pattern:$0x73625140]
    %v349 = vld.sshfl [vmem:[#allocation1 + $0x38] sm:$0xff pattern:$0x73625140]
    %350 = vst [vmem:[#allocation1] ss:$4 sm:$0xff] %v25
    %v351 = vld.sshfl [vmem:[#allocation1] sm:$0xff pattern:$0x73625140]
    %v352 = vld.sshfl [vmem:[#allocation1 + $0x8] sm:$0xff pattern:$0x73625140]
    %v353 = vld.sshfl [vmem:[#allocation1 + $0x10] sm:$0xff pattern:$0x73625140]
    %vm372 = vcmask 392192
    %v373 = vsel %vm372, %v353, 0
    %375 = vmatpush.msra.mxu0 %v41
    %376 = vmatpush.msra.mxu0 %v40
    %377 = vmatpush.msra.mxu0 %v39
    %378 = vmatpush.msra.mxu0 %v38
    %379 = vmatpush.msra.mxu0 %v37
    %380 = vmatpush.msra.mxu0 %v36
    %381 = vmatpush.msra.mxu0 %v35
    %382 = vmatpush.msra.mxu0 %v34
    %383 = vmatpush.msra.mxu0 %v33
    %384 = vmatpush.msra.mxu0 %v32
    %385 = vmatpush.msra.mxu0 %v31
    %386 = vmatpush.msra.mxu0 %v30
    %387 = vmatpush.msra.mxu0 %v29
    %388 = vmatpush.msra.mxu0 %v28
    %389 = vmatpush.msra.mxu0 %v27
    %390 = vmatpush.msra.mxu0 %v26
    %391 = vmatmul.f32.gmra.mxu0 %v332
    %v392 = vpop.f32.mrf.mxu0
    %v393 = vadd.f32 %v322, %v392
    %394 = vdwg.mxu0
    %395 = vmatpush.msra.mxu0 %v57
    %396 = vmatpush.msra.mxu0 %v56
    %397 = vmatpush.msra.mxu0 %v55
    %398 = vmatpush.msra.mxu0 %v54
    %399 = vmatpush.msra.mxu0 %v53
    %400 = vmatpush.msra.mxu0 %v52
    %401 = vmatpush.msra.mxu0 %v51
    %402 = vmatpush.msra.mxu0 %v50
    %403 = vmatpush.msra.mxu0 %v49
    %404 = vmatpush.msra.mxu0 %v48
    %405 = vmatpush.msra.mxu0 %v47
    %406 = vmatpush.msra.mxu0 %v46
    %407 = vmatpush.msra.mxu0 %v45
    %408 = vmatpush.msra.mxu0 %v44
    %409 = vmatpush.msra.mxu0 %v43
    %410 = vmatpush.msra.mxu0 %v42
    %411 = vmatmul.f32.gmra.mxu0 %v333
    %v412 = vpop.f32.mrf.mxu0
    %v413 = vadd.f32 %v393, %v412
    %414 = vdwg.mxu0
    %415 = vmatpush.msra.mxu0 %v73
    %416 = vmatpush.msra.mxu0 %v72
    %417 = vmatpush.msra.mxu0 %v71
    %418 = vmatpush.msra.mxu0 %v70
    %419 = vmatpush.msra.mxu0 %v69
    %420 = vmatpush.msra.mxu0 %v68
    %421 = vmatpush.msra.mxu0 %v67
    %422 = vmatpush.msra.mxu0 %v66
    %423 = vmatpush.msra.mxu0 %v65
    %424 = vmatpush.msra.mxu0 %v64
    %425 = vmatpush.msra.mxu0 %v63
    %426 = vmatpush.msra.mxu0 %v62
    %427 = vmatpush.msra.mxu0 %v61
    %428 = vmatpush.msra.mxu0 %v60
    %429 = vmatpush.msra.mxu0 %v59
    %430 = vmatpush.msra.mxu0 %v58
    %431 = vmatmul.f32.gmra.mxu0 %v334
    %v432 = vpop.f32.mrf.mxu0
    %v433 = vadd.f32 %v413, %v432
    %434 = vdwg.mxu0
    %435 = vmatpush.msra.mxu0 %v89
    %436 = vmatpush.msra.mxu0 %v88
    %437 = vmatpush.msra.mxu0 %v87
    %438 = vmatpush.msra.mxu0 %v86
    %439 = vmatpush.msra.mxu0 %v85
    %440 = vmatpush.msra.mxu0 %v84
    %441 = vmatpush.msra.mxu0 %v83
    %442 = vmatpush.msra.mxu0 %v82
    %443 = vmatpush.msra.mxu0 %v81
    %444 = vmatpush.msra.mxu0 %v80
    %445 = vmatpush.msra.mxu0 %v79
    %446 = vmatpush.msra.mxu0 %v78
    %447 = vmatpush.msra.mxu0 %v77
    %448 = vmatpush.msra.mxu0 %v76
    %449 = vmatpush.msra.mxu0 %v75
    %450 = vmatpush.msra.mxu0 %v74
    %451 = vmatmul.f32.gmra.mxu0 %v335
    %v452 = vpop.f32.mrf.mxu0
    %v453 = vadd.f32 %v433, %v452
    %454 = vdwg.mxu0
    %455 = vmatpush.msra.mxu0 %v105
    %456 = vmatpush.msra.mxu0 %v104
    %457 = vmatpush.msra.mxu0 %v103
    %458 = vmatpush.msra.mxu0 %v102
    %459 = vmatpush.msra.mxu0 %v101
    %460 = vmatpush.msra.mxu0 %v100
    %461 = vmatpush.msra.mxu0 %v99
    %462 = vmatpush.msra.mxu0 %v98
    %463 = vmatpush.msra.mxu0 %v97
    %464 = vmatpush.msra.mxu0 %v96
    %465 = vmatpush.msra.mxu0 %v95
    %466 = vmatpush.msra.mxu0 %v94
    %467 = vmatpush.msra.mxu0 %v93
    %468 = vmatpush.msra.mxu0 %v92
    %469 = vmatpush.msra.mxu0 %v91
    %470 = vmatpush.msra.mxu0 %v90
    %471 = vmatmul.f32.gmra.mxu0 %v336
    %v472 = vpop.f32.mrf.mxu0
    %v473 = vadd.f32 %v453, %v472
    %474 = vdwg.mxu0
    %475 = vmatpush.msra.mxu0 %v121
    %476 = vmatpush.msra.mxu0 %v120
    %477 = vmatpush.msra.mxu0 %v119
    %478 = vmatpush.msra.mxu0 %v118
    %479 = vmatpush.msra.mxu0 %v117
    %480 = vmatpush.msra.mxu0 %v116
    %481 = vmatpush.msra.mxu0 %v115
    %482 = vmatpush.msra.mxu0 %v114
    %483 = vmatpush.msra.mxu0 %v113
    %484 = vmatpush.msra.mxu0 %v112
    %485 = vmatpush.msra.mxu0 %v111
    %486 = vmatpush.msra.mxu0 %v110
    %487 = vmatpush.msra.mxu0 %v109
    %488 = vmatpush.msra.mxu0 %v108
    %489 = vmatpush.msra.mxu0 %v107
    %490 = vmatpush.msra.mxu0 %v106
    %491 = vmatmul.f32.gmra.mxu0 %v337
    %v492 = vpop.f32.mrf.mxu0
    %v493 = vadd.f32 %v473, %v492
    %494 = vdwg.mxu0
    %495 = vmatpush.msra.mxu0 %v137
    %496 = vmatpush.msra.mxu0 %v136
    %497 = vmatpush.msra.mxu0 %v135
    %498 = vmatpush.msra.mxu0 %v134
    %499 = vmatpush.msra.mxu0 %v133
    %500 = vmatpush.msra.mxu0 %v132
    %501 = vmatpush.msra.mxu0 %v131
    %502 = vmatpush.msra.mxu0 %v130
    %503 = vmatpush.msra.mxu0 %v129
    %504 = vmatpush.msra.mxu0 %v128
    %505 = vmatpush.msra.mxu0 %v127
    %506 = vmatpush.msra.mxu0 %v126
    %507 = vmatpush.msra.mxu0 %v125
    %508 = vmatpush.msra.mxu0 %v124
    %509 = vmatpush.msra.mxu0 %v123
    %510 = vmatpush.msra.mxu0 %v122
    %511 = vmatmul.f32.gmra.mxu0 %v338
    %v512 = vpop.f32.mrf.mxu0
    %v513 = vadd.f32 %v493, %v512
    %514 = vdwg.mxu0
    %515 = vmatpush.msra.mxu0 %v153
    %516 = vmatpush.msra.mxu0 %v152
    %517 = vmatpush.msra.mxu0 %v151
    %518 = vmatpush.msra.mxu0 %v150
    %519 = vmatpush.msra.mxu0 %v149
    %520 = vmatpush.msra.mxu0 %v148
    %521 = vmatpush.msra.mxu0 %v147
    %522 = vmatpush.msra.mxu0 %v146
    %523 = vmatpush.msra.mxu0 %v145
    %524 = vmatpush.msra.mxu0 %v144
    %525 = vmatpush.msra.mxu0 %v143
    %526 = vmatpush.msra.mxu0 %v142
    %527 = vmatpush.msra.mxu0 %v141
    %528 = vmatpush.msra.mxu0 %v140
    %529 = vmatpush.msra.mxu0 %v139
    %530 = vmatpush.msra.mxu0 %v138
    %531 = vmatmul.f32.gmra.mxu0 %v339
    %v532 = vpop.f32.mrf.mxu0
    %v533 = vadd.f32 %v513, %v532
    %534 = vdwg.mxu0
    %535 = vmatpush.msra.mxu0 %v169
    %536 = vmatpush.msra.mxu0 %v168
    %537 = vmatpush.msra.mxu0 %v167
    %538 = vmatpush.msra.mxu0 %v166
    %539 = vmatpush.msra.mxu0 %v165
    %540 = vmatpush.msra.mxu0 %v164
    %541 = vmatpush.msra.mxu0 %v163
    %542 = vmatpush.msra.mxu0 %v162
    %543 = vmatpush.msra.mxu0 %v161
    %544 = vmatpush.msra.mxu0 %v160
    %545 = vmatpush.msra.mxu0 %v159
    %546 = vmatpush.msra.mxu0 %v158
    %547 = vmatpush.msra.mxu0 %v157
    %548 = vmatpush.msra.mxu0 %v156
    %549 = vmatpush.msra.mxu0 %v155
    %550 = vmatpush.msra.mxu0 %v154
    %551 = vmatmul.f32.gmra.mxu0 %v342
    %v552 = vpop.f32.mrf.mxu0
    %v553 = vadd.f32 %v533, %v552
    %554 = vdwg.mxu0
    %555 = vmatpush.msra.mxu0 %v185
    %556 = vmatpush.msra.mxu0 %v184
    %557 = vmatpush.msra.mxu0 %v183
    %558 = vmatpush.msra.mxu0 %v182
    %559 = vmatpush.msra.mxu0 %v181
    %560 = vmatpush.msra.mxu0 %v180
    %561 = vmatpush.msra.mxu0 %v179
    %562 = vmatpush.msra.mxu0 %v178
    %563 = vmatpush.msra.mxu0 %v177
    %564 = vmatpush.msra.mxu0 %v176
    %565 = vmatpush.msra.mxu0 %v175
    %566 = vmatpush.msra.mxu0 %v174
    %567 = vmatpush.msra.mxu0 %v173
    %568 = vmatpush.msra.mxu0 %v172
    %569 = vmatpush.msra.mxu0 %v171
    %570 = vmatpush.msra.mxu0 %v170
    %571 = vmatmul.f32.gmra.mxu0 %v343
    %v572 = vpop.f32.mrf.mxu0
    %v573 = vadd.f32 %v553, %v572
    %574 = vdwg.mxu0
    %575 = vmatpush.msra.mxu0 %v201
    %576 = vmatpush.msra.mxu0 %v200
    %577 = vmatpush.msra.mxu0 %v199
    %578 = vmatpush.msra.mxu0 %v198
    %579 = vmatpush.msra.mxu0 %v197
    %580 = vmatpush.msra.mxu0 %v196
    %581 = vmatpush.msra.mxu0 %v195
    %582 = vmatpush.msra.mxu0 %v194
    %583 = vmatpush.msra.mxu0 %v193
    %584 = vmatpush.msra.mxu0 %v192
    %585 = vmatpush.msra.mxu0 %v191
    %586 = vmatpush.msra.mxu0 %v190
    %587 = vmatpush.msra.mxu0 %v189
    %588 = vmatpush.msra.mxu0 %v188
    %589 = vmatpush.msra.mxu0 %v187
    %590 = vmatpush.msra.mxu0 %v186
    %591 = vmatmul.f32.gmra.mxu0 %v344
    %v592 = vpop.f32.mrf.mxu0
    %v593 = vadd.f32 %v573, %v592
    %594 = vdwg.mxu0
    %595 = vmatpush.msra.mxu0 %v217
    %596 = vmatpush.msra.mxu0 %v216
    %597 = vmatpush.msra.mxu0 %v215
    %598 = vmatpush.msra.mxu0 %v214
    %599 = vmatpush.msra.mxu0 %v213
    %600 = vmatpush.msra.mxu0 %v212
    %601 = vmatpush.msra.mxu0 %v211
    %602 = vmatpush.msra.mxu0 %v210
    %603 = vmatpush.msra.mxu0 %v209
    %604 = vmatpush.msra.mxu0 %v208
    %605 = vmatpush.msra.mxu0 %v207
    %606 = vmatpush.msra.mxu0 %v206
    %607 = vmatpush.msra.mxu0 %v205
    %608 = vmatpush.msra.mxu0 %v204
    %609 = vmatpush.msra.mxu0 %v203
    %610 = vmatpush.msra.mxu0 %v202
    %611 = vmatmul.f32.gmra.mxu0 %v345
    %v612 = vpop.f32.mrf.mxu0
    %v613 = vadd.f32 %v593, %v612
    %614 = vdwg.mxu0
    %615 = vmatpush.msra.mxu0 %v233
    %616 = vmatpush.msra.mxu0 %v232
    %617 = vmatpush.msra.mxu0 %v231
    %618 = vmatpush.msra.mxu0 %v230
    %619 = vmatpush.msra.mxu0 %v229
    %620 = vmatpush.msra.mxu0 %v228
    %621 = vmatpush.msra.mxu0 %v227
    %622 = vmatpush.msra.mxu0 %v226
    %623 = vmatpush.msra.mxu0 %v225
    %624 = vmatpush.msra.mxu0 %v224
    %625 = vmatpush.msra.mxu0 %v223
    %626 = vmatpush.msra.mxu0 %v222
    %627 = vmatpush.msra.mxu0 %v221
    %628 = vmatpush.msra.mxu0 %v220
    %629 = vmatpush.msra.mxu0 %v219
    %630 = vmatpush.msra.mxu0 %v218
    %631 = vmatmul.f32.gmra.mxu0 %v346
    %v632 = vpop.f32.mrf.mxu0
    %v633 = vadd.f32 %v613, %v632
    %634 = vdwg.mxu0
    %635 = vmatpush.msra.mxu0 %v249
    %636 = vmatpush.msra.mxu0 %v248
    %637 = vmatpush.msra.mxu0 %v247
    %638 = vmatpush.msra.mxu0 %v246
    %639 = vmatpush.msra.mxu0 %v245
    %640 = vmatpush.msra.mxu0 %v244
    %641 = vmatpush.msra.mxu0 %v243
    %642 = vmatpush.msra.mxu0 %v242
    %643 = vmatpush.msra.mxu0 %v241
    %644 = vmatpush.msra.mxu0 %v240
    %645 = vmatpush.msra.mxu0 %v239
    %646 = vmatpush.msra.mxu0 %v238
    %647 = vmatpush.msra.mxu0 %v237
    %648 = vmatpush.msra.mxu0 %v236
    %649 = vmatpush.msra.mxu0 %v235
    %650 = vmatpush.msra.mxu0 %v234
    %651 = vmatmul.f32.gmra.mxu0 %v347
    %v652 = vpop.f32.mrf.mxu0
    %v653 = vadd.f32 %v633, %v652
    %654 = vdwg.mxu0
    %655 = vmatpush.msra.mxu0 %v265
    %656 = vmatpush.msra.mxu0 %v264
    %657 = vmatpush.msra.mxu0 %v263
    %658 = vmatpush.msra.mxu0 %v262
    %659 = vmatpush.msra.mxu0 %v261
    %660 = vmatpush.msra.mxu0 %v260
    %661 = vmatpush.msra.mxu0 %v259
    %662 = vmatpush.msra.mxu0 %v258
    %663 = vmatpush.msra.mxu0 %v257
    %664 = vmatpush.msra.mxu0 %v256
    %665 = vmatpush.msra.mxu0 %v255
    %666 = vmatpush.msra.mxu0 %v254
    %667 = vmatpush.msra.mxu0 %v253
    %668 = vmatpush.msra.mxu0 %v252
    %669 = vmatpush.msra.mxu0 %v251
    %670 = vmatpush.msra.mxu0 %v250
    %671 = vmatmul.f32.gmra.mxu0 %v348
    %v672 = vpop.f32.mrf.mxu0
    %v673 = vadd.f32 %v653, %v672
    %674 = vdwg.mxu0
    %675 = vmatpush.msra.mxu0 %v281
    %676 = vmatpush.msra.mxu0 %v280
    %677 = vmatpush.msra.mxu0 %v279
    %678 = vmatpush.msra.mxu0 %v278
    %679 = vmatpush.msra.mxu0 %v277
    %680 = vmatpush.msra.mxu0 %v276
    %681 = vmatpush.msra.mxu0 %v275
    %682 = vmatpush.msra.mxu0 %v274
    %683 = vmatpush.msra.mxu0 %v273
    %684 = vmatpush.msra.mxu0 %v272
    %685 = vmatpush.msra.mxu0 %v271
    %686 = vmatpush.msra.mxu0 %v270
    %687 = vmatpush.msra.mxu0 %v269
    %688 = vmatpush.msra.mxu0 %v268
    %689 = vmatpush.msra.mxu0 %v267
    %690 = vmatpush.msra.mxu0 %v266
    %691 = vmatmul.f32.gmra.mxu0 %v349
    %v692 = vpop.f32.mrf.mxu0
    %v693 = vadd.f32 %v673, %v692
    %694 = vdwg.mxu0
    %695 = vmatpush.msra.mxu0 %v297
    %696 = vmatpush.msra.mxu0 %v296
    %697 = vmatpush.msra.mxu0 %v295
    %698 = vmatpush.msra.mxu0 %v294
    %699 = vmatpush.msra.mxu0 %v293
    %700 = vmatpush.msra.mxu0 %v292
    %701 = vmatpush.msra.mxu0 %v291
    %702 = vmatpush.msra.mxu0 %v290
    %703 = vmatpush.msra.mxu0 %v289
    %704 = vmatpush.msra.mxu0 %v288
    %705 = vmatpush.msra.mxu0 %v287
    %706 = vmatpush.msra.mxu0 %v286
    %707 = vmatpush.msra.mxu0 %v285
    %708 = vmatpush.msra.mxu0 %v284
    %709 = vmatpush.msra.mxu0 %v283
    %710 = vmatpush.msra.mxu0 %v282
    %711 = vmatmul.f32.gmra.mxu0 %v351
    %v712 = vpop.f32.mrf.mxu0
    %v713 = vadd.f32 %v693, %v712
    %714 = vdwg.mxu0
    %715 = vmatpush.msra.mxu0 %v313
    %716 = vmatpush.msra.mxu0 %v312
    %717 = vmatpush.msra.mxu0 %v311
    %718 = vmatpush.msra.mxu0 %v310
    %719 = vmatpush.msra.mxu0 %v309
    %720 = vmatpush.msra.mxu0 %v308
    %721 = vmatpush.msra.mxu0 %v307
    %722 = vmatpush.msra.mxu0 %v306
    %723 = vmatpush.msra.mxu0 %v305
    %724 = vmatpush.msra.mxu0 %v304
    %725 = vmatpush.msra.mxu0 %v303
    %726 = vmatpush.msra.mxu0 %v302
    %727 = vmatpush.msra.mxu0 %v301
    %728 = vmatpush.msra.mxu0 %v300
    %729 = vmatpush.msra.mxu0 %v299
    %730 = vmatpush.msra.mxu0 %v298
    %731 = vmatmul.f32.gmra.mxu0 %v352
    %v732 = vpop.f32.mrf.mxu0
    %v733 = vadd.f32 %v713, %v732
    %734 = vdwg.mxu0
    %735 = vmatpush.msra.mxu0 0.0
    %736 = vmatpush.msra.mxu0 0.0
    %737 = vmatpush.msra.mxu0 0.0
    %738 = vmatpush.msra.mxu0 0.0
    %739 = vmatpush.msra.mxu0 0.0
    %740 = vmatpush.msra.mxu0 0.0
    %741 = vmatpush.msra.mxu0 0.0
    %742 = vmatpush.msra.mxu0 0.0
    %743 = vmatpush.msra.mxu0 0.0
    %744 = vmatpush.msra.mxu0 0.0
    %745 = vmatpush.msra.mxu0 %v319
    %746 = vmatpush.msra.mxu0 %v318
    %747 = vmatpush.msra.mxu0 %v317
    %748 = vmatpush.msra.mxu0 %v316
    %749 = vmatpush.msra.mxu0 %v315
    %750 = vmatpush.msra.mxu0 %v314
    %751 = vmatmul.f32.gmra.mxu0 %v373
    %v752 = vpop.f32.mrf.mxu0
    %v753 = vadd.f32 %v733, %v752
    %754 = vdwg.mxu0
    %v755 = vmax.f32 %v753, 0.0
    %v756 = vld [vmem:[%s3] sm:$0xff]
    %v757 = vld [vmem:[%s3 + $0x8] sm:$0xff]
    %v758 = vld [vmem:[%s3 + $0x10] sm:$0xff]
    %v759 = vld [vmem:[%s3 + $0x18] sm:$0xff]
    %v760 = vld [vmem:[%s3 + $0x20] sm:$0xff]
    %v761 = vld [vmem:[%s3 + $0x28] sm:$0xff]
    %v762 = vld [vmem:[%s3 + $0x30] sm:$0xff]
    %v763 = vld [vmem:[%s3 + $0x38] sm:$0xff]
    %v764 = vld [vmem:[%s3 + $0x40] sm:$0xff]
    %v765 = vld [vmem:[%s3 + $0x48] sm:$0xff]
    %v766 = vld [vmem:[%s3 + $0x50] sm:$0xff]
    %v767 = vld [vmem:[%s3 + $0x58] sm:$0xff]
    %v768 = vld [vmem:[%s3 + $0x60] sm:$0xf]
    %v769 = vld [vmem:[%s4] sm:$0x1]
    %v771 = vperm.slane %v769, 0
    %vm773 = vcmask 818176
    %v775 = vsel %vm773, %v755, 0
    %vm777 = vcmask 1043456
    %v779 = vsel %vm777, %v768, 0
    %781 = vmatpush.msra.mxu0 0.0
    %782 = vmatpush.msra.mxu0 0.0
    %783 = vmatpush.msra.mxu0 0.0
    %784 = vmatpush.msra.mxu0 %v779
    %785 = vmatpush.msra.mxu0 %v767
    %786 = vmatpush.msra.mxu0 %v766
    %787 = vmatpush.msra.mxu0 %v765
    %788 = vmatpush.msra.mxu0 %v764
    %789 = vmatpush.msra.mxu0 %v763
    %790 = vmatpush.msra.mxu0 %v762
    %791 = vmatpush.msra.mxu0 %v761
    %792 = vmatpush.msra.mxu0 %v760
    %793 = vmatpush.msra.mxu0 %v759
    %794 = vmatpush.msra.mxu0 %v758
    %795 = vmatpush.msra.mxu0 %v757
    %796 = vmatpush.msra.mxu0 %v756
    %797 = vmatmul.f32.gmra.mxu0 %v775
    %v798 = vpop.f32.mrf.mxu0
    %v799 = vadd.f32 %v771, %v798
    %800 = vdwg.mxu0
    %vm801 = vcmask 9216
    %v802 = vsel %vm801, %v799, -inf
    %803 = vmax.xlane.f32.xlu0 %v802
    %v804 = vpop.xlane.xlu0 %803
    %v805 = vsub.f32 %v799, %v804
    %v806 = vmul.f32 %v805, 1.442695
    %v807 = vpow.pop %v806
    %v808 = vsel %vm801, %v807, 0.0
    %809 = vadd.xlane.f32.xlu0 %v808
    %v810 = vpop.xlane.xlu0 %809
    %v811 = vrcp.pop %v810
    %v812 = vmul.f32 %v810, %v811
    %v813 = vsub.f32 1.0, %v812
    %v814 = vmul.f32 %v811, %v813
    %v815 = vadd.f32 %v811, %v814
    %vm816 = vweird.f32 %v810
    %vm817 = vweird.f32 %v811
    %vm818 = vmor %vm816, %vm817
    %v819 = vsel %vm818, %v811, %v815
    %v820 = vand.u32 2147483647, %v810
    %vm821 = vcmp.eq.f32.partialorder %v820, 8.507059e+37
    %v822 = vand.u32 %v810, 2147483648
    %v823 = vor.u32 1.1754944e-38, %v822
    %v824 = vsel %vm821, %v823, %v819
    %v825 = vmul.f32 %v807, %v824
    %826 = vst.msk [vmem:[#allocation2] sm:$0x3] %vm801, %v825
    // Predicated region
    $region22: #{tpu_custom_call.1} parent=1 // pred_check
      _
    $region23: #{tpu_custom_call.1} parent=1 // pred_check_branch
      %828 = sbr.rel (0) target = $region25
    $region24: #{tpu_custom_call.1} parent=1 // pred_region
      %830 = vsyncadd [#allocation3], 0
      %s832 = sshll.u32 [#allocation2], 4
      %s833 = int_to_ptr.vmem [resolvable:$true] %s832
      %s834 = sshll.u32 %s5, 4
      %s835 = int_to_ptr.hbm [resolvable:$true] %s834
      %837 = dma.vmem_to_hbm [thread:$0]  %s833, 32, %s835, [#allocation3]
    $region25: #{tpu_custom_call.1} parent=1 // pred_fallthru
      _
    // Predicated region
    $region26: #{tpu_custom_call.1} parent=1 // pred_check
      _
    $region27: #{tpu_custom_call.1} parent=1 // pred_check_branch
      %839 = sbr.rel (0) target = $region29
    $region28: #{tpu_custom_call.1} parent=1 // pred_region
      %841 = dma.done [#allocation3], 32
    $region29: #{tpu_custom_call.1} parent=1 // pred_fallthru
      _
    %842 = vsyncpa [#allocation3], 1

</llo_original>
